<compile_context>
chip_gen: v7x
topology: tpu7x:2x2x1
jax: 0.10.0
libtpu: 0.0.40
codegen_flags: <defaults>
</compile_context>

<pallas_src>
import functools

import jax
import jax.numpy as jnp
from jax.experimental import pallas as pl
from jax.experimental.pallas import tpu as pltpu


_MAX_TILE_B = 1024   # big enough to reach ~85%+ of HBM roofline on v6e/v7x
_MIN_GRID_STEPS = 4  # >= 2 double-buffered tiles per TensorCore on v7x


def _round_up(x, m):
    return (x + m - 1) // m * m


def _choose_tile_b(B):
    """Largest tile <= _MAX_TILE_B that still yields >= _MIN_GRID_STEPS steps."""
    t = _round_up(max(1, -(-B // _MIN_GRID_STEPS)), 8)   # ceil(B/4) rounded to 8
    return max(8, min(_MAX_TILE_B, t))


def _mlp_kernel(x_ref, w1_ref, b1_ref, w2_ref, b2_ref, o_ref, *, compute_dtype):
    # Cast x to the MXU compute dtype in-kernel (no-op if x already arrives
    # in compute_dtype).  Accumulation / bias / ReLU stay in f32 on the VPU.
    x = x_ref[...].astype(compute_dtype)
    h = jnp.dot(x, w1_ref[...], preferred_element_type=jnp.float32)
    h = jnp.maximum(h + b1_ref[...], 0.0)
    h = h.astype(compute_dtype)
    y = jnp.dot(h, w2_ref[...], preferred_element_type=jnp.float32)
    y = jnp.maximum(y + b2_ref[...], 0.0)
    o_ref[...] = y.astype(o_ref.dtype)


@functools.partial(jax.jit, static_argnames=("compute_dtype",))
def embedding_compressor(x, w1, b1, w2, b2, compute_dtype=jnp.bfloat16):
    """Fused MLP forward pass.

    x:  [B, D_in]   (f32 or bf16)
    w1: [D_in, H]   (PyTorch linear1.weight.T)
    b1: [1, H] or [H]
    w2: [H, D_out]  (PyTorch linear2.weight.T)
    b2: [1, D_out] or [D_out]
    returns [B, D_out] float32
    """
    B, D_in = x.shape
    H = w1.shape[1]
    D_out = w2.shape[1]

    b1 = b1.reshape(1, H).astype(jnp.float32)
    b2 = b2.reshape(1, D_out).astype(jnp.float32)

    # Weights are tiny (~0.3 MB); cast once here.  If they are static across
    # calls, callers can pre-cast to compute_dtype to skip even this.
    w1_c = w1.astype(compute_dtype)
    w2_c = w2.astype(compute_dtype)

    tile_b = _choose_tile_b(B)
    grid = (pl.cdiv(B, tile_b),)   # ragged last block handled by Pallas masking

    w_itemsize = jnp.dtype(compute_dtype).itemsize
    cost = pl.CostEstimate(
        flops=2 * B * (D_in * H + H * D_out),
        transcendentals=0,
        bytes_accessed=(
            B * D_in * x.dtype.itemsize        # x (native dtype, single read)
            + D_in * H * w_itemsize            # w1
            + H * D_out * w_itemsize           # w2
            + (H + D_out) * 4                  # biases (f32)
            + B * D_out * 4                    # output (f32, unpadded)
        ),
    )

    kernel = functools.partial(_mlp_kernel, compute_dtype=compute_dtype)

    out = pl.pallas_call(
        kernel,
        out_shape=jax.ShapeDtypeStruct((B, D_out), jnp.float32),
        grid=grid,
        in_specs=[
            pl.BlockSpec((tile_b, D_in), lambda i: (i, 0)),   # x: tiled over batch
            pl.BlockSpec((D_in, H), lambda i: (0, 0)),        # w1: VMEM-resident
            pl.BlockSpec((1, H), lambda i: (0, 0)),           # b1: VMEM-resident
            pl.BlockSpec((H, D_out), lambda i: (0, 0)),       # w2: VMEM-resident
            pl.BlockSpec((1, D_out), lambda i: (0, 0)),       # b2: VMEM-resident
        ],
        out_specs=pl.BlockSpec((tile_b, D_out), lambda i: (i, 0)),
        compiler_params=pltpu.CompilerParams(
            dimension_semantics=("parallel",),       # batch tiles shard across TCs
            vmem_limit_bytes=24 * 1024 * 1024,       # safe on v5e/v6e/v7x
        ),
        cost_estimate=cost,
    )(x, w1_c, b1, w2_c, b2)

    return out


def init_params(key, input_dim=512, hidden_dim=256, output_dim=64):
    """Deterministic init mimicking nn.Linear's default U(-1/sqrt(fan_in), 1/sqrt(fan_in))."""
    k1, k2, k3, k4 = jax.random.split(key, 4)
    bound1 = 1.0 / (input_dim ** 0.5)
    bound2 = 1.0 / (hidden_dim ** 0.5)
    w1 = jax.random.uniform(k1, (input_dim, hidden_dim), jnp.float32, -bound1, bound1)
    b1 = jax.random.uniform(k2, (1, hidden_dim), jnp.float32, -bound1, bound1)
    w2 = jax.random.uniform(k3, (hidden_dim, output_dim), jnp.float32, -bound2, bound2)
    b2 = jax.random.uniform(k4, (1, output_dim), jnp.float32, -bound2, bound2)
    return w1, b1, w2, b2


def reference_forward(x, w1, b1, w2, b2, compute_dtype=jnp.float32):
    xc = x.astype(compute_dtype)
    w1c = w1.astype(compute_dtype)
    w2c = w2.astype(compute_dtype)
    h = jnp.dot(xc, w1c, preferred_element_type=jnp.float32) + b1
    h = jnp.maximum(h, 0.0)
    y = jnp.dot(h.astype(compute_dtype), w2c, preferred_element_type=jnp.float32) + b2
    return jnp.maximum(y, 0.0)


if __name__ == "__main__":
    key = jax.random.PRNGKey(0)
    kx, kp, kx2 = jax.random.split(key, 3)

    D_in, H, D_out = 512, 256, 64
    w1, b1, w2, b2 = init_params(kp, D_in, H, D_out)

    # Small batch (single grid step).
    B = 8
    x = jax.random.normal(kx, (B, D_in), jnp.float32)
    out = jax.block_until_ready(embedding_compressor(x, w1, b1, w2, b2))
    assert out.shape == (B, D_out)

    ref_bf16 = reference_forward(x, w1, b1, w2, b2, compute_dtype=jnp.bfloat16)
    ref_f32 = reference_forward(x, w1, b1, w2, b2, compute_dtype=jnp.float32)
    assert jnp.allclose(out, ref_bf16, atol=2e-3, rtol=2e-3), "mismatch vs bf16 reference"
    assert jnp.allclose(out, ref_f32, atol=5e-2, rtol=5e-2), "mismatch vs f32 reference"

    # Ragged batch exercising the non-divisible grid (4 tiles, masked last block).
    B2 = 300
    x2 = jax.random.normal(kx2, (B2, D_in), jnp.float32)
    out2 = jax.block_until_ready(embedding_compressor(x2, w1, b1, w2, b2))
    assert out2.shape == (B2, D_out)
    ref2 = reference_forward(x2, w1, b1, w2, b2, compute_dtype=jnp.bfloat16)
    assert jnp.allclose(out2, ref2, atol=2e-3, rtol=2e-3), "mismatch on ragged batch"

    print("KERNEL_OK")
</pallas_src>

<mosaic_0001>
module attributes {stable_mosaic.version = 11 : i64} {
  func.func @_mlp_kernel(%arg0: i32, %arg1: memref<8x512xf32, #tpu.memory_space<vmem>>, %arg2: memref<512x256xbf16, #tpu.memory_space<vmem>>, %arg3: memref<1x256xf32, #tpu.memory_space<vmem>>, %arg4: memref<256x64xbf16, #tpu.memory_space<vmem>>, %arg5: memref<1x64xf32, #tpu.memory_space<vmem>>, %arg6: memref<8x64xf32, #tpu.memory_space<vmem>>) attributes {dimension_semantics = [#tpu.dimension_semantics<parallel>], iteration_bounds = array<i64: 1>, scalar_prefetch = 0 : i64, scratch_operands = 0 : i64, tpu.core_type = #tpu.core_type<tc>, window_params = [{transform_indices = @transform_0, window_bounds = array<i64: 8, 512>}, {pipeline_mode = #tpu.pipeline_mode<synchronous>, transform_indices = @transform_1, window_bounds = array<i64: 512, 256>}, {pipeline_mode = #tpu.pipeline_mode<synchronous>, transform_indices = @transform_2, window_bounds = array<i64: 1, 256>}, {pipeline_mode = #tpu.pipeline_mode<synchronous>, transform_indices = @transform_3, window_bounds = array<i64: 256, 64>}, {pipeline_mode = #tpu.pipeline_mode<synchronous>, transform_indices = @transform_4, window_bounds = array<i64: 1, 64>}, {transform_indices = @transform_5, window_bounds = array<i64: 8, 64>}]} {
    %c0 = arith.constant 0 : index
    %c0_0 = arith.constant 0 : index
    %0 = vector.load %arg1[%c0, %c0_0] : memref<8x512xf32, #tpu.memory_space<vmem>>, vector<8x512xf32>
    %1 = arith.truncf %0 : vector<8x512xf32> to vector<8x512xbf16>
    %c0_1 = arith.constant 0 : index
    %c0_2 = arith.constant 0 : index
    %2 = vector.load %arg2[%c0_1, %c0_2] : memref<512x256xbf16, #tpu.memory_space<vmem>>, vector<512x256xbf16>
    %cst = arith.constant dense<0.000000e+00> : vector<8x256xf32>
    %3 = tpu.matmul %1, %2, %cst {dimension_numbers = #tpu.dot_dimension_numbers<[1], [0], [0], [1], [0, 0, 1, 1], [], []>} : vector<8x512xbf16>, vector<512x256xbf16>, vector<8x256xf32> -> vector<8x256xf32>
    %c0_3 = arith.constant 0 : index
    %c0_4 = arith.constant 0 : index
    %4 = vector.load %arg3[%c0_3, %c0_4] : memref<1x256xf32, #tpu.memory_space<vmem>>, vector<1x256xf32>
    %5 = vector.broadcast %4 : vector<1x256xf32> to vector<8x256xf32>
    %6 = arith.addf %3, %5 : vector<8x256xf32>
    %cst_5 = arith.constant 0.000000e+00 : f32
    %7 = vector.broadcast %cst_5 : f32 to vector<8x256xf32>
    %8 = arith.maximumf %6, %7 : vector<8x256xf32>
    %9 = arith.truncf %8 : vector<8x256xf32> to vector<8x256xbf16>
    %c0_6 = arith.constant 0 : index
    %c0_7 = arith.constant 0 : index
    %10 = vector.load %arg4[%c0_6, %c0_7] : memref<256x64xbf16, #tpu.memory_space<vmem>>, vector<256x64xbf16>
    %cst_8 = arith.constant dense<0.000000e+00> : vector<8x64xf32>
    %11 = tpu.matmul %9, %10, %cst_8 {dimension_numbers = #tpu.dot_dimension_numbers<[1], [0], [0], [1], [0, 0, 1, 1], [], []>} : vector<8x256xbf16>, vector<256x64xbf16>, vector<8x64xf32> -> vector<8x64xf32>
    %c0_9 = arith.constant 0 : index
    %c0_10 = arith.constant 0 : index
    %12 = vector.load %arg5[%c0_9, %c0_10] : memref<1x64xf32, #tpu.memory_space<vmem>>, vector<1x64xf32>
    %13 = vector.broadcast %12 : vector<1x64xf32> to vector<8x64xf32>
    %14 = arith.addf %11, %13 : vector<8x64xf32>
    %cst_11 = arith.constant 0.000000e+00 : f32
    %15 = vector.broadcast %cst_11 : f32 to vector<8x64xf32>
    %16 = arith.maximumf %14, %15 : vector<8x64xf32>
    %c0_12 = arith.constant 0 : index
    %c0_13 = arith.constant 0 : index
    %17 = vector.load %arg6[%c0_12, %c0_13] : memref<8x64xf32, #tpu.memory_space<vmem>>, vector<8x64xf32>
    tpu.vector_store %arg6[%c0_12, %c0_13], %16 {strides = array<i32>} : memref<8x64xf32, #tpu.memory_space<vmem>>, vector<8x64xf32>,
    return
  }
  func.func @transform_0(%arg0: i32) -> (i32, i32) {
    %c0_i32 = arith.constant 0 : i32
    %c0_i32_0 = arith.constant 0 : i32
    return %arg0, %c0_i32 : i32, i32
  }
  func.func @transform_1(%arg0: i32) -> (i32, i32) {
    %c0_i32 = arith.constant 0 : i32
    %c0_i32_0 = arith.constant 0 : i32
    %c0_i32_1 = arith.constant 0 : i32
    return %c0_i32, %c0_i32_0 : i32, i32
  }
  func.func @transform_2(%arg0: i32) -> (i32, i32) {
    %c0_i32 = arith.constant 0 : i32
    %c0_i32_0 = arith.constant 0 : i32
    %c0_i32_1 = arith.constant 0 : i32
    return %c0_i32, %c0_i32_0 : i32, i32
  }
  func.func @transform_3(%arg0: i32) -> (i32, i32) {
    %c0_i32 = arith.constant 0 : i32
    %c0_i32_0 = arith.constant 0 : i32
    %c0_i32_1 = arith.constant 0 : i32
    return %c0_i32, %c0_i32_0 : i32, i32
  }
  func.func @transform_4(%arg0: i32) -> (i32, i32) {
    %c0_i32 = arith.constant 0 : i32
    %c0_i32_0 = arith.constant 0 : i32
    %c0_i32_1 = arith.constant 0 : i32
    return %c0_i32, %c0_i32_0 : i32, i32
  }
  func.func @transform_5(%arg0: i32) -> (i32, i32) {
    %c0_i32 = arith.constant 0 : i32
    %c0_i32_0 = arith.constant 0 : i32
    return %arg0, %c0_i32 : i32, i32
  }
}

</mosaic_0001>

<llo_original>
// kernel: embedding_compressor.1
$region0: #{embedding_compressor.1}
  #allocation0 [shape = 'u32[]', space=smem, size = 0x4, offset = 0x4, fixed_abs, tag = 'smem constant byte address 0x4 - core index']
  #allocation1 [shape = 'u32[144,128]{1,0:T(1,128)}', space=vmem, size = 0x12000, scoped, tag = 'internal scratch']
  %s0 = inlined_call_operand.vmem [shape: f32[8,512], index: 0, kind: input, shape index: {}]
  %s1 = inlined_call_operand.vmem [shape: bf16[512,256], index: 1, kind: input, shape index: {}]
  %s2 = inlined_call_operand.vmem [shape: f32[1,256], index: 2, kind: input, shape index: {}]
  %s3 = inlined_call_operand.vmem [shape: bf16[256,64], index: 3, kind: input, shape index: {}]
  %s4 = inlined_call_operand.vmem [shape: f32[1,64], index: 4, kind: input, shape index: {}]
  %s5 = inlined_call_operand.hbm [shape: f32[8,64], index: 5, kind: output, shape index: {}]
  %s6 = sld [smem:[#allocation0]]
  $region30: #{embedding_compressor.1} parent=0
    _
  %s8 = ssub.s32 1, %s6
  %s9 = scalar_select 0, %s8, %s6
  $region1: #{embedding_compressor.1} parent=0
    #allocation2 [shape = 'u8[4096]{0}', space=vmem, size = 0x1000, scoped, tag = 'output window, operand 0, single buffered']
    #allocation3 [shape = 's32[1]{0}', space=sflag, size = 0x4, scoped, tag = 'scoped memory for embedding_compressor.1']
    %10 = vsyncpa [#allocation3], 0
    // Predicated region
    $region2: #{embedding_compressor.1} parent=1 // pred_check
      _
    $region3: #{embedding_compressor.1} parent=1 // pred_check_branch
      %12 = sbr.rel (0) target = $region5
    $region4: #{embedding_compressor.1} parent=1 // pred_region
      _
    $region5: #{embedding_compressor.1} parent=1 // pred_fallthru
      _
    // Predicated region
    $region6: #{embedding_compressor.1} parent=1 // pred_check
      _
    $region7: #{embedding_compressor.1} parent=1 // pred_check_branch
      %14 = sbr.rel (0) target = $region9
    $region8: #{embedding_compressor.1} parent=1 // pred_region
      _
    $region9: #{embedding_compressor.1} parent=1 // pred_fallthru
      _
    // Predicated region
    $region10: #{embedding_compressor.1} parent=1 // pred_check
      _
    $region11: #{embedding_compressor.1} parent=1 // pred_check_branch
      %16 = sbr.rel (0) target = $region13
    $region12: #{embedding_compressor.1} parent=1 // pred_region
      _
    $region13: #{embedding_compressor.1} parent=1 // pred_fallthru
      _
    // Predicated region
    $region14: #{embedding_compressor.1} parent=1 // pred_check
      _
    $region15: #{embedding_compressor.1} parent=1 // pred_check_branch
      %18 = sbr.rel (0) target = $region17
    $region16: #{embedding_compressor.1} parent=1 // pred_region
      _
    $region17: #{embedding_compressor.1} parent=1 // pred_fallthru
      _
    // Predicated region
    $region18: #{embedding_compressor.1} parent=1 // pred_check
      _
    $region19: #{embedding_compressor.1} parent=1 // pred_check_branch
      %20 = sbr.rel (0) target = $region21
    $region20: #{embedding_compressor.1} parent=1 // pred_region
      _
    $region21: #{embedding_compressor.1} parent=1 // pred_fallthru
      _
    %v22 = vld [vmem:[%s0] sm:$0xff]
    %v23 = vld [vmem:[%s0 + $0x8] sm:$0xff]
    %v24 = vld [vmem:[%s0 + $0x10] sm:$0xff]
    %v25 = vld [vmem:[%s0 + $0x18] sm:$0xff]
    %v26 = vpack.c.bf16 %v22, %v22
    %v27 = vpack.c.bf16 %v23, %v23
    %v28 = vpack.c.bf16 %v24, %v24
    %v29 = vpack.c.bf16 %v25, %v25
    %v30 = vld [vmem:[%s1] sm:$0xff]
    %v31 = vld [vmem:[%s1 + $0x8] sm:$0xff]
    %v32 = vld [vmem:[%s1 + $0x10] sm:$0xff]
    %v33 = vld [vmem:[%s1 + $0x18] sm:$0xff]
    %v34 = vld [vmem:[%s1 + $0x20] sm:$0xff]
    %v35 = vld [vmem:[%s1 + $0x28] sm:$0xff]
    %v36 = vld [vmem:[%s1 + $0x30] sm:$0xff]
    %v37 = vld [vmem:[%s1 + $0x38] sm:$0xff]
    %v38 = vld [vmem:[%s1 + $0x40] sm:$0xff]
    %v39 = vld [vmem:[%s1 + $0x48] sm:$0xff]
    %v40 = vld [vmem:[%s1 + $0x50] sm:$0xff]
    %v41 = vld [vmem:[%s1 + $0x58] sm:$0xff]
    %v42 = vld [vmem:[%s1 + $0x60] sm:$0xff]
    %v43 = vld [vmem:[%s1 + $0x68] sm:$0xff]
    %v44 = vld [vmem:[%s1 + $0x70] sm:$0xff]
    %v45 = vld [vmem:[%s1 + $0x78] sm:$0xff]
    %v46 = vld [vmem:[%s1 + $0x80] sm:$0xff]
    %v47 = vld [vmem:[%s1 + $0x88] sm:$0xff]
    %v48 = vld [vmem:[%s1 + $0x90] sm:$0xff]
    %v49 = vld [vmem:[%s1 + $0x98] sm:$0xff]
    %v50 = vld [vmem:[%s1 + $0xa0] sm:$0xff]
    %v51 = vld [vmem:[%s1 + $0xa8] sm:$0xff]
    %v52 = vld [vmem:[%s1 + $0xb0] sm:$0xff]
    %v53 = vld [vmem:[%s1 + $0xb8] sm:$0xff]
    %v54 = vld [vmem:[%s1 + $0xc0] sm:$0xff]
    %v55 = vld [vmem:[%s1 + $0xc8] sm:$0xff]
    %v56 = vld [vmem:[%s1 + $0xd0] sm:$0xff]
    %v57 = vld [vmem:[%s1 + $0xd8] sm:$0xff]
    %v58 = vld [vmem:[%s1 + $0xe0] sm:$0xff]
    %v59 = vld [vmem:[%s1 + $0xe8] sm:$0xff]
    %v60 = vld [vmem:[%s1 + $0xf0] sm:$0xff]
    %v61 = vld [vmem:[%s1 + $0xf8] sm:$0xff]
    %v62 = vld [vmem:[%s1 + $0x100] sm:$0xff]
    %v63 = vld [vmem:[%s1 + $0x108] sm:$0xff]
    %v64 = vld [vmem:[%s1 + $0x110] sm:$0xff]
    %v65 = vld [vmem:[%s1 + $0x118] sm:$0xff]
    %v66 = vld [vmem:[%s1 + $0x120] sm:$0xff]
    %v67 = vld [vmem:[%s1 + $0x128] sm:$0xff]
    %v68 = vld [vmem:[%s1 + $0x130] sm:$0xff]
    %v69 = vld [vmem:[%s1 + $0x138] sm:$0xff]
    %v70 = vld [vmem:[%s1 + $0x140] sm:$0xff]
    %v71 = vld [vmem:[%s1 + $0x148] sm:$0xff]
    %v72 = vld [vmem:[%s1 + $0x150] sm:$0xff]
    %v73 = vld [vmem:[%s1 + $0x158] sm:$0xff]
    %v74 = vld [vmem:[%s1 + $0x160] sm:$0xff]
    %v75 = vld [vmem:[%s1 + $0x168] sm:$0xff]
    %v76 = vld [vmem:[%s1 + $0x170] sm:$0xff]
    %v77 = vld [vmem:[%s1 + $0x178] sm:$0xff]
    %v78 = vld [vmem:[%s1 + $0x180] sm:$0xff]
    %v79 = vld [vmem:[%s1 + $0x188] sm:$0xff]
    %v80 = vld [vmem:[%s1 + $0x190] sm:$0xff]
    %v81 = vld [vmem:[%s1 + $0x198] sm:$0xff]
    %v82 = vld [vmem:[%s1 + $0x1a0] sm:$0xff]
    %v83 = vld [vmem:[%s1 + $0x1a8] sm:$0xff]
    %v84 = vld [vmem:[%s1 + $0x1b0] sm:$0xff]
    %v85 = vld [vmem:[%s1 + $0x1b8] sm:$0xff]
    %v86 = vld [vmem:[%s1 + $0x1c0] sm:$0xff]
    %v87 = vld [vmem:[%s1 + $0x1c8] sm:$0xff]
    %v88 = vld [vmem:[%s1 + $0x1d0] sm:$0xff]
    %v89 = vld [vmem:[%s1 + $0x1d8] sm:$0xff]
    %v90 = vld [vmem:[%s1 + $0x1e0] sm:$0xff]
    %v91 = vld [vmem:[%s1 + $0x1e8] sm:$0xff]
    %v92 = vld [vmem:[%s1 + $0x1f0] sm:$0xff]
    %v93 = vld [vmem:[%s1 + $0x1f8] sm:$0xff]
    %v94 = vld [vmem:[%s2] sm:$0x3]
    %v96 = vlaneseq
    %v97 = vshrl.u32 %v96, 7
    %v98 = vsub.s32 0, %v97
    %v99 = vrot.slane %v94, %v98
    %v100 = vlaneseq
    %v101 = vshrl.u32 %v100, 7
    %v102 = vsub.s32 1, %v101
    %v103 = vrot.slane %v94, %v102
    %v170 = vunpack.c.l.b16 %v30
    %v171 = vunpack.c.h.b16 %v30
    %v172 = vunpack.c.l.b16 %v31
    %v173 = vunpack.c.h.b16 %v31
    %v174 = vunpack.c.l.b16 %v32
    %v175 = vunpack.c.h.b16 %v32
    %v176 = vunpack.c.l.b16 %v33
    %v177 = vunpack.c.h.b16 %v33
    %v178 = vunpack.c.l.b16 %v34
    %v179 = vunpack.c.h.b16 %v34
    %v180 = vunpack.c.l.b16 %v35
    %v181 = vunpack.c.h.b16 %v35
    %v182 = vunpack.c.l.b16 %v36
    %v183 = vunpack.c.h.b16 %v36
    %v184 = vunpack.c.l.b16 %v37
    %v185 = vunpack.c.h.b16 %v37
    %v186 = vunpack.c.l.b16 %v38
    %v187 = vunpack.c.h.b16 %v38
    %v188 = vunpack.c.l.b16 %v39
    %v189 = vunpack.c.h.b16 %v39
    %v190 = vunpack.c.l.b16 %v40
    %v191 = vunpack.c.h.b16 %v40
    %v192 = vunpack.c.l.b16 %v41
    %v193 = vunpack.c.h.b16 %v41
    %v194 = vunpack.c.l.b16 %v42
    %v195 = vunpack.c.h.b16 %v42
    %v196 = vunpack.c.l.b16 %v43
    %v197 = vunpack.c.h.b16 %v43
    %v198 = vunpack.c.l.b16 %v44
    %v199 = vunpack.c.h.b16 %v44
    %v200 = vunpack.c.l.b16 %v45
    %v201 = vunpack.c.h.b16 %v45
    %v202 = vunpack.c.l.b16 %v46
    %v203 = vunpack.c.h.b16 %v46
    %v204 = vunpack.c.l.b16 %v47
    %v205 = vunpack.c.h.b16 %v47
    %v206 = vunpack.c.l.b16 %v48
    %v207 = vunpack.c.h.b16 %v48
    %v208 = vunpack.c.l.b16 %v49
    %v209 = vunpack.c.h.b16 %v49
    %v210 = vunpack.c.l.b16 %v50
    %v211 = vunpack.c.h.b16 %v50
    %v212 = vunpack.c.l.b16 %v51
    %v213 = vunpack.c.h.b16 %v51
    %v214 = vunpack.c.l.b16 %v52
    %v215 = vunpack.c.h.b16 %v52
    %v216 = vunpack.c.l.b16 %v53
    %v217 = vunpack.c.h.b16 %v53
    %v218 = vunpack.c.l.b16 %v54
    %v219 = vunpack.c.h.b16 %v54
    %v220 = vunpack.c.l.b16 %v55
    %v221 = vunpack.c.h.b16 %v55
    %v222 = vunpack.c.l.b16 %v56
    %v223 = vunpack.c.h.b16 %v56
    %v224 = vunpack.c.l.b16 %v57
    %v225 = vunpack.c.h.b16 %v57
    %v226 = vunpack.c.l.b16 %v58
    %v227 = vunpack.c.h.b16 %v58
    %v228 = vunpack.c.l.b16 %v59
    %v229 = vunpack.c.h.b16 %v59
    %v230 = vunpack.c.l.b16 %v60
    %v231 = vunpack.c.h.b16 %v60
    %v232 = vunpack.c.l.b16 %v61
    %v233 = vunpack.c.h.b16 %v61
    %v234 = vunpack.c.l.b16 %v62
    %v235 = vunpack.c.h.b16 %v62
    %v236 = vunpack.c.l.b16 %v63
    %v237 = vunpack.c.h.b16 %v63
    %v238 = vunpack.c.l.b16 %v64
    %v239 = vunpack.c.h.b16 %v64
    %v240 = vunpack.c.l.b16 %v65
    %v241 = vunpack.c.h.b16 %v65
    %v242 = vunpack.c.l.b16 %v66
    %v243 = vunpack.c.h.b16 %v66
    %v244 = vunpack.c.l.b16 %v67
    %v245 = vunpack.c.h.b16 %v67
    %v246 = vunpack.c.l.b16 %v68
    %v247 = vunpack.c.h.b16 %v68
    %v248 = vunpack.c.l.b16 %v69
    %v249 = vunpack.c.h.b16 %v69
    %v250 = vunpack.c.l.b16 %v70
    %v251 = vunpack.c.h.b16 %v70
    %v252 = vunpack.c.l.b16 %v71
    %v253 = vunpack.c.h.b16 %v71
    %v254 = vunpack.c.l.b16 %v72
    %v255 = vunpack.c.h.b16 %v72
    %v256 = vunpack.c.l.b16 %v73
    %v257 = vunpack.c.h.b16 %v73
    %v258 = vunpack.c.l.b16 %v74
    %v259 = vunpack.c.h.b16 %v74
    %v260 = vunpack.c.l.b16 %v75
    %v261 = vunpack.c.h.b16 %v75
    %v262 = vunpack.c.l.b16 %v76
    %v263 = vunpack.c.h.b16 %v76
    %v264 = vunpack.c.l.b16 %v77
    %v265 = vunpack.c.h.b16 %v77
    %v266 = vunpack.c.l.b16 %v78
    %v267 = vunpack.c.h.b16 %v78
    %v268 = vunpack.c.l.b16 %v79
    %v269 = vunpack.c.h.b16 %v79
    %v270 = vunpack.c.l.b16 %v80
    %v271 = vunpack.c.h.b16 %v80
    %v272 = vunpack.c.l.b16 %v81
    %v273 = vunpack.c.h.b16 %v81
    %v274 = vunpack.c.l.b16 %v82
    %v275 = vunpack.c.h.b16 %v82
    %v276 = vunpack.c.l.b16 %v83
    %v277 = vunpack.c.h.b16 %v83
    %v278 = vunpack.c.l.b16 %v84
    %v279 = vunpack.c.h.b16 %v84
    %v280 = vunpack.c.l.b16 %v85
    %v281 = vunpack.c.h.b16 %v85
    %v282 = vunpack.c.l.b16 %v86
    %v283 = vunpack.c.h.b16 %v86
    %v284 = vunpack.c.l.b16 %v87
    %v285 = vunpack.c.h.b16 %v87
    %v286 = vunpack.c.l.b16 %v88
    %v287 = vunpack.c.h.b16 %v88
    %v288 = vunpack.c.l.b16 %v89
    %v289 = vunpack.c.h.b16 %v89
    %v290 = vunpack.c.l.b16 %v90
    %v291 = vunpack.c.h.b16 %v90
    %v292 = vunpack.c.l.b16 %v91
    %v293 = vunpack.c.h.b16 %v91
    %v294 = vunpack.c.l.b16 %v92
    %v295 = vunpack.c.h.b16 %v92
    %v296 = vunpack.c.l.b16 %v93
    %v297 = vunpack.c.h.b16 %v93
    %v298 = vpack.c.b16 %v172, %v170
    %v299 = vpack.c.b16 %v173, %v171
    %v300 = vpack.c.b16 %v176, %v174
    %v301 = vpack.c.b16 %v177, %v175
    %v302 = vpack.c.b16 %v180, %v178
    %v303 = vpack.c.b16 %v181, %v179
    %v304 = vpack.c.b16 %v184, %v182
    %v305 = vpack.c.b16 %v185, %v183
    %v306 = vpack.c.b16 %v188, %v186
    %v307 = vpack.c.b16 %v189, %v187
    %v308 = vpack.c.b16 %v192, %v190
    %v309 = vpack.c.b16 %v193, %v191
    %v310 = vpack.c.b16 %v196, %v194
    %v311 = vpack.c.b16 %v197, %v195
    %v312 = vpack.c.b16 %v200, %v198
    %v313 = vpack.c.b16 %v201, %v199
    %v314 = vpack.c.b16 %v204, %v202
    %v315 = vpack.c.b16 %v205, %v203
    %v316 = vpack.c.b16 %v208, %v206
    %v317 = vpack.c.b16 %v209, %v207
    %v318 = vpack.c.b16 %v212, %v210
    %v319 = vpack.c.b16 %v213, %v211
    %v320 = vpack.c.b16 %v216, %v214
    %v321 = vpack.c.b16 %v217, %v215
    %v322 = vpack.c.b16 %v220, %v218
    %v323 = vpack.c.b16 %v221, %v219
    %v324 = vpack.c.b16 %v224, %v222
    %v325 = vpack.c.b16 %v225, %v223
    %v326 = vpack.c.b16 %v228, %v226
    %v327 = vpack.c.b16 %v229, %v227
    %v328 = vpack.c.b16 %v232, %v230
    %v329 = vpack.c.b16 %v233, %v231
    %v330 = vpack.c.b16 %v236, %v234
    %v331 = vpack.c.b16 %v237, %v235
    %v332 = vpack.c.b16 %v240, %v238
    %v333 = vpack.c.b16 %v241, %v239
    %v334 = vpack.c.b16 %v244, %v242
    %v335 = vpack.c.b16 %v245, %v243
    %v336 = vpack.c.b16 %v248, %v246
    %v337 = vpack.c.b16 %v249, %v247
    %v338 = vpack.c.b16 %v252, %v250
    %v339 = vpack.c.b16 %v253, %v251
    %v340 = vpack.c.b16 %v256, %v254
    %v341 = vpack.c.b16 %v257, %v255
    %v342 = vpack.c.b16 %v260, %v258
    %v343 = vpack.c.b16 %v261, %v259
    %v344 = vpack.c.b16 %v264, %v262
    %v345 = vpack.c.b16 %v265, %v263
    %v346 = vpack.c.b16 %v268, %v266
    %v347 = vpack.c.b16 %v269, %v267
    %v348 = vpack.c.b16 %v272, %v270
    %v349 = vpack.c.b16 %v273, %v271
    %v350 = vpack.c.b16 %v276, %v274
    %v351 = vpack.c.b16 %v277, %v275
    %v352 = vpack.c.b16 %v280, %v278
    %v353 = vpack.c.b16 %v281, %v279
    %v354 = vpack.c.b16 %v284, %v282
    %v355 = vpack.c.b16 %v285, %v283
    %v356 = vpack.c.b16 %v288, %v286
    %v357 = vpack.c.b16 %v289, %v287
    %v358 = vpack.c.b16 %v292, %v290
    %v359 = vpack.c.b16 %v293, %v291
    %v360 = vpack.c.b16 %v296, %v294
    %v361 = vpack.c.b16 %v297, %v295
    %426 = vmatprep.subr.bf16.mxu0 %v299
    %427 = vmatpush1.bf16.msra.mxu0 %v298
    %428 = vmatprep.subr.bf16.mxu0 %v301
    %429 = vmatpush1.bf16.msra.mxu0 %v300
    %430 = vmatprep.subr.bf16.mxu0 %v303
    %431 = vmatpush1.bf16.msra.mxu0 %v302
    %432 = vmatprep.subr.bf16.mxu0 %v305
    %433 = vmatpush1.bf16.msra.mxu0 %v304
    %434 = vmatprep.subr.bf16.mxu0 %v307
    %435 = vmatpush1.bf16.msra.mxu0 %v306
    %436 = vmatprep.subr.bf16.mxu0 %v309
    %437 = vmatpush1.bf16.msra.mxu0 %v308
    %438 = vmatprep.subr.bf16.mxu0 %v311
    %439 = vmatpush1.bf16.msra.mxu0 %v310
    %440 = vmatprep.subr.bf16.mxu0 %v313
    %441 = vmatpush1.bf16.msra.mxu0 %v312
    %442 = vmatprep.subr.bf16.mxu0 %v315
    %443 = vmatpush1.bf16.msra.mxu0 %v314
    %444 = vmatprep.subr.bf16.mxu0 %v317
    %445 = vmatpush1.bf16.msra.mxu0 %v316
    %446 = vmatprep.subr.bf16.mxu0 %v319
    %447 = vmatpush1.bf16.msra.mxu0 %v318
    %448 = vmatprep.subr.bf16.mxu0 %v321
    %449 = vmatpush1.bf16.msra.mxu0 %v320
    %450 = vmatprep.subr.bf16.mxu0 %v323
    %451 = vmatpush1.bf16.msra.mxu0 %v322
    %452 = vmatprep.subr.bf16.mxu0 %v325
    %453 = vmatpush1.bf16.msra.mxu0 %v324
    %454 = vmatprep.subr.bf16.mxu0 %v327
    %455 = vmatpush1.bf16.msra.mxu0 %v326
    %456 = vmatprep.subr.bf16.mxu0 %v329
    %457 = vmatpush1.bf16.msra.mxu0 %v328
    %458 = vmatprep.mubr.bf16.mxu0 %v27
    %459 = vmatmul.mubr.bf16.gmra.mrb[0].mxu0 %v26
    %v460 = vpop.f32.mrb[0].mxu0
    %v461 = vadd.f32 %v99, %v460
    %v462 = vpop.f32.mrb[0].mxu0
    %v463 = vadd.f32 %v103, %v462
    %v464 = vpop.f32.mrb[0].mxu0
    %v465 = vpop.f32.mrb[0].mxu0
    %466 = vdwg.mxu0
    %467 = vmatprep.subr.bf16.mxu0 %v331
    %468 = vmatpush1.bf16.msra.mxu0 %v330
    %469 = vmatprep.subr.bf16.mxu0 %v333
    %470 = vmatpush1.bf16.msra.mxu0 %v332
    %471 = vmatprep.subr.bf16.mxu0 %v335
    %472 = vmatpush1.bf16.msra.mxu0 %v334
    %473 = vmatprep.subr.bf16.mxu0 %v337
    %474 = vmatpush1.bf16.msra.mxu0 %v336
    %475 = vmatprep.subr.bf16.mxu0 %v339
    %476 = vmatpush1.bf16.msra.mxu0 %v338
    %477 = vmatprep.subr.bf16.mxu0 %v341
    %478 = vmatpush1.bf16.msra.mxu0 %v340
    %479 = vmatprep.subr.bf16.mxu0 %v343
    %480 = vmatpush1.bf16.msra.mxu0 %v342
    %481 = vmatprep.subr.bf16.mxu0 %v345
    %482 = vmatpush1.bf16.msra.mxu0 %v344
    %483 = vmatprep.subr.bf16.mxu0 %v347
    %484 = vmatpush1.bf16.msra.mxu0 %v346
    %485 = vmatprep.subr.bf16.mxu0 %v349
    %486 = vmatpush1.bf16.msra.mxu0 %v348
    %487 = vmatprep.subr.bf16.mxu0 %v351
    %488 = vmatpush1.bf16.msra.mxu0 %v350
    %489 = vmatprep.subr.bf16.mxu0 %v353
    %490 = vmatpush1.bf16.msra.mxu0 %v352
    %491 = vmatprep.subr.bf16.mxu0 %v355
    %492 = vmatpush1.bf16.msra.mxu0 %v354
    %493 = vmatprep.subr.bf16.mxu0 %v357
    %494 = vmatpush1.bf16.msra.mxu0 %v356
    %495 = vmatprep.subr.bf16.mxu0 %v359
    %496 = vmatpush1.bf16.msra.mxu0 %v358
    %497 = vmatprep.subr.bf16.mxu0 %v361
    %498 = vmatpush1.bf16.msra.mxu0 %v360
    %499 = vmatprep.mubr.bf16.mxu0 %v29
    %500 = vmatmul.mubr.bf16.gmra.mrb[0].mxu0 %v28
    %v501 = vpop.f32.mrb[0].mxu0
    %v502 = vadd.f32 %v461, %v501
    %v503 = vpop.f32.mrb[0].mxu0
    %v504 = vadd.f32 %v463, %v503
    %v505 = vpop.f32.mrb[0].mxu0
    %v506 = vpop.f32.mrb[0].mxu0
    %507 = vdwg.mxu0
    %v508 = vmax.f32 %v502, 0.0
    %v509 = vmax.f32 %v504, 0.0
    %v510 = vpack.c.bf16 %v508, %v508
    %v511 = vpack.c.bf16 %v509, %v509
    %v512 = vld [vmem:[%s3] sm:$0xf]
    %v513 = vld [vmem:[%s3 + $0x4] sm:$0xf]
    %v514 = vld [vmem:[%s3 + $0x8] sm:$0xf]
    %v515 = vld [vmem:[%s3 + $0xc] sm:$0xf]
    %v516 = vld [vmem:[%s3 + $0x10] sm:$0xf]
    %v517 = vld [vmem:[%s3 + $0x14] sm:$0xf]
    %v518 = vld [vmem:[%s3 + $0x18] sm:$0xf]
    %v519 = vld [vmem:[%s3 + $0x1c] sm:$0xf]
    %v520 = vld [vmem:[%s3 + $0x20] sm:$0xf]
    %v521 = vld [vmem:[%s3 + $0x24] sm:$0xf]
    %v522 = vld [vmem:[%s3 + $0x28] sm:$0xf]
    %v523 = vld [vmem:[%s3 + $0x2c] sm:$0xf]
    %v524 = vld [vmem:[%s3 + $0x30] sm:$0xf]
    %v525 = vld [vmem:[%s3 + $0x34] sm:$0xf]
    %v526 = vld [vmem:[%s3 + $0x38] sm:$0xf]
    %v527 = vld [vmem:[%s3 + $0x3c] sm:$0xf]
    %v528 = vld [vmem:[%s3 + $0x40] sm:$0xf]
    %v529 = vld [vmem:[%s3 + $0x44] sm:$0xf]
    %v530 = vld [vmem:[%s3 + $0x48] sm:$0xf]
    %v531 = vld [vmem:[%s3 + $0x4c] sm:$0xf]
    %v532 = vld [vmem:[%s3 + $0x50] sm:$0xf]
    %v533 = vld [vmem:[%s3 + $0x54] sm:$0xf]
    %v534 = vld [vmem:[%s3 + $0x58] sm:$0xf]
    %v535 = vld [vmem:[%s3 + $0x5c] sm:$0xf]
    %v536 = vld [vmem:[%s3 + $0x60] sm:$0xf]
    %v537 = vld [vmem:[%s3 + $0x64] sm:$0xf]
    %v538 = vld [vmem:[%s3 + $0x68] sm:$0xf]
    %v539 = vld [vmem:[%s3 + $0x6c] sm:$0xf]
    %v540 = vld [vmem:[%s3 + $0x70] sm:$0xf]
    %v541 = vld [vmem:[%s3 + $0x74] sm:$0xf]
    %v542 = vld [vmem:[%s3 + $0x78] sm:$0xf]
    %v543 = vld [vmem:[%s3 + $0x7c] sm:$0xf]
    %v544 = vld [vmem:[%s4] sm:$0x1]
    %v546 = vlaneseq
    %v547 = vshrl.u32 %v546, 7
    %v548 = vsub.s32 0, %v547
    %v549 = vrot.slane %v544, %v548
    %v583 = vunpack.c.l.b16 %v512
    %v584 = vunpack.c.l.b16 %v513
    %v585 = vunpack.c.l.b16 %v514
    %v586 = vunpack.c.l.b16 %v515
    %v587 = vunpack.c.l.b16 %v516
    %v588 = vunpack.c.l.b16 %v517
    %v589 = vunpack.c.l.b16 %v518
    %v590 = vunpack.c.l.b16 %v519
    %v591 = vunpack.c.l.b16 %v520
    %v592 = vunpack.c.l.b16 %v521
    %v593 = vunpack.c.l.b16 %v522
    %v594 = vunpack.c.l.b16 %v523
    %v595 = vunpack.c.l.b16 %v524
    %v596 = vunpack.c.l.b16 %v525
    %v597 = vunpack.c.l.b16 %v526
    %v598 = vunpack.c.l.b16 %v527
    %v599 = vunpack.c.l.b16 %v528
    %v600 = vunpack.c.l.b16 %v529
    %v601 = vunpack.c.l.b16 %v530
    %v602 = vunpack.c.l.b16 %v531
    %v603 = vunpack.c.l.b16 %v532
    %v604 = vunpack.c.l.b16 %v533
    %v605 = vunpack.c.l.b16 %v534
    %v606 = vunpack.c.l.b16 %v535
    %v607 = vunpack.c.l.b16 %v536
    %v608 = vunpack.c.l.b16 %v537
    %v609 = vunpack.c.l.b16 %v538
    %v610 = vunpack.c.l.b16 %v539
    %v611 = vunpack.c.l.b16 %v540
    %v612 = vunpack.c.l.b16 %v541
    %v613 = vunpack.c.l.b16 %v542
    %v614 = vunpack.c.l.b16 %v543
    %v615 = vpack.c.b16 %v584, %v583
    %v616 = vpack.c.b16 %v586, %v585
    %v617 = vpack.c.b16 %v588, %v587
    %v618 = vpack.c.b16 %v590, %v589
    %v619 = vpack.c.b16 %v592, %v591
    %v620 = vpack.c.b16 %v594, %v593
    %v621 = vpack.c.b16 %v596, %v595
    %v622 = vpack.c.b16 %v598, %v597
    %v623 = vpack.c.b16 %v600, %v599
    %v624 = vpack.c.b16 %v602, %v601
    %v625 = vpack.c.b16 %v604, %v603
    %v626 = vpack.c.b16 %v606, %v605
    %v627 = vpack.c.b16 %v608, %v607
    %v628 = vpack.c.b16 %v610, %v609
    %v629 = vpack.c.b16 %v612, %v611
    %v630 = vpack.c.b16 %v614, %v613
    %647 = vmatprep.subr.bf16.mxu0 0
    %648 = vmatpush1.bf16.msra.mxu0 %v615
    %649 = vmatprep.subr.bf16.mxu0 0
    %650 = vmatpush1.bf16.msra.mxu0 %v616
    %651 = vmatprep.subr.bf16.mxu0 0
    %652 = vmatpush1.bf16.msra.mxu0 %v617
    %653 = vmatprep.subr.bf16.mxu0 0
    %654 = vmatpush1.bf16.msra.mxu0 %v618
    %655 = vmatprep.subr.bf16.mxu0 0
    %656 = vmatpush1.bf16.msra.mxu0 %v619
    %657 = vmatprep.subr.bf16.mxu0 0
    %658 = vmatpush1.bf16.msra.mxu0 %v620
    %659 = vmatprep.subr.bf16.mxu0 0
    %660 = vmatpush1.bf16.msra.mxu0 %v621
    %661 = vmatprep.subr.bf16.mxu0 0
    %662 = vmatpush1.bf16.msra.mxu0 %v622
    %663 = vmatprep.subr.bf16.mxu0 0
    %664 = vmatpush1.bf16.msra.mxu0 %v623
    %665 = vmatprep.subr.bf16.mxu0 0
    %666 = vmatpush1.bf16.msra.mxu0 %v624
    %667 = vmatprep.subr.bf16.mxu0 0
    %668 = vmatpush1.bf16.msra.mxu0 %v625
    %669 = vmatprep.subr.bf16.mxu0 0
    %670 = vmatpush1.bf16.msra.mxu0 %v626
    %671 = vmatprep.subr.bf16.mxu0 0
    %672 = vmatpush1.bf16.msra.mxu0 %v627
    %673 = vmatprep.subr.bf16.mxu0 0
    %674 = vmatpush1.bf16.msra.mxu0 %v628
    %675 = vmatprep.subr.bf16.mxu0 0
    %676 = vmatpush1.bf16.msra.mxu0 %v629
    %677 = vmatprep.subr.bf16.mxu0 0
    %678 = vmatpush1.bf16.msra.mxu0 %v630
    %679 = vmatprep.mubr.bf16.mxu0 %v511
    %680 = vmatmul.mubr.bf16.gmra.mrb[0].mxu0 %v510
    %v681 = vpop.f32.mrb[0].mxu0
    %v682 = vadd.f32 %v549, %v681
    %v683 = vpop.f32.mrb[0].mxu0
    %v684 = vpop.f32.mrb[0].mxu0
    %v685 = vpop.f32.mrb[0].mxu0
    %686 = vdwg.mxu0
    %v687 = vmax.f32 %v682, 0.0
    %vm688 = vcmask 523264
    %689 = vst.msk [vmem:[#allocation2] sm:$0xff] %vm688, %v687
    // Predicated region
    $region22: #{embedding_compressor.1} parent=1 // pred_check
      _
    $region23: #{embedding_compressor.1} parent=1 // pred_check_branch
      %691 = sbr.rel (0) target = $region25
    $region24: #{embedding_compressor.1} parent=1 // pred_region
      %s693 = ssub.s32 128, 128
      %694 = vsyncadd [#allocation3], %s693
      %s696 = sshll.u32 [#allocation2], 4
      %s697 = int_to_ptr.vmem [resolvable:$true] %s696
      %699 = dma.vmem_to_hbm [thread:$0]  %s697, 128, %s5, [#allocation3]
    $region25: #{embedding_compressor.1} parent=1 // pred_fallthru
      _
    // Predicated region
    $region26: #{embedding_compressor.1} parent=1 // pred_check
      _
    $region27: #{embedding_compressor.1} parent=1 // pred_check_branch
      %701 = sbr.rel (0) target = $region29
    $region28: #{embedding_compressor.1} parent=1 // pred_region
      %702 = dma.done [#allocation3], 128
    $region29: #{embedding_compressor.1} parent=1 // pred_fallthru
      _
    %703 = vsyncpa [#allocation3], 1

</llo_original>
